<compile_context>
chip_gen: v5e
topology: v5e:2x2
jax: 0.10.0
libtpu: 0.0.40
codegen_flags: <defaults>
</compile_context>

<pallas_src>
import functools

import jax
import jax.numpy as jnp
from jax import lax
from jax.experimental import pallas as pl
from jax.experimental.pallas import tpu as pltpu


def _lm_loss_kernel(y_pred_ref, y_true_ref, picked_ref, entropy_ref, *, vocab_chunk):
    """Fused log-softmax gather + conditional entropy over one row block.

    y_pred_ref : (RT, V)  float (f32/bf16)  logits block
    y_true_ref : (RT, 1)  int32             true token ids
    picked_ref : (RT, 1)  float32           log-prob of the true token
    entropy_ref: (RT, 1)  float32           -(p * log p).sum(-1)
    """
    rt, v = y_pred_ref.shape
    ck = min(vocab_chunk, v)
    n_full = v // ck
    tail = v - n_full * ck

    idx = y_true_ref[...]                               # (RT, 1) int32
    zero = jnp.zeros((), y_pred_ref.dtype)

    # ---------- pass 1: running row max + raw logit at the true index ----------
    # Done in the native input dtype (bf16 vregs hold 16x128 -> half the VALU/vld
    # work for this pass); the gather is fused here so it shares pass 1's loads.
    def max_gather(blk, cols, start, m, g):
        m = jnp.maximum(m, jnp.max(blk, axis=-1, keepdims=True).astype(jnp.float32))
        hit = jnp.where(cols == (idx - start), blk, zero)     # <=1 nonzero per row
        g = g + jnp.sum(hit, axis=-1, keepdims=True).astype(jnp.float32)
        return m, g

    m = jnp.full((rt, 1), -jnp.inf, jnp.float32)
    g = jnp.zeros((rt, 1), jnp.float32)
    cols_ck = lax.broadcasted_iota(jnp.int32, (rt, ck), 1)    # hoisted out of loop

    if n_full == 1:
        m, g = max_gather(y_pred_ref[:, 0:ck], cols_ck, 0, m, g)
    else:
        def p1_body(c, carry):
            start = pl.multiple_of(c * ck, ck)
            blk = y_pred_ref[:, pl.ds(start, ck)]
            return max_gather(blk, cols_ck, start, *carry)
        m, g = lax.fori_loop(0, n_full, p1_body, (m, g))
    if tail:
        t0 = n_full * ck
        cols_t = lax.broadcasted_iota(jnp.int32, (rt, tail), 1)
        m, g = max_gather(y_pred_ref[:, t0:v], cols_t, t0, m, g)

    # ---------- pass 2: s = sum(exp(z)), sez = sum(exp(z) * z) in f32 ----------
    def exp_sums(blk32, s, sez):
        z = blk32 - m
        ez = jnp.exp(z)                                       # EUP
        s = s + jnp.sum(ez, axis=-1, keepdims=True)
        sez = sez + jnp.sum(ez * z, axis=-1, keepdims=True)
        return s, sez

    s = jnp.zeros((rt, 1), jnp.float32)
    sez = jnp.zeros((rt, 1), jnp.float32)
    if n_full == 1:
        s, sez = exp_sums(y_pred_ref[:, 0:ck].astype(jnp.float32), s, sez)
    else:
        def p2_body(c, carry):
            start = pl.multiple_of(c * ck, ck)
            blk32 = y_pred_ref[:, pl.ds(start, ck)].astype(jnp.float32)
            return exp_sums(blk32, *carry)
        s, sez = lax.fori_loop(0, n_full, p2_body, (s, sez))
    if tail:
        t0 = n_full * ck
        s, sez = exp_sums(y_pred_ref[:, t0:v].astype(jnp.float32), s, sez)

    # ---------- finalize (column-only work, exact division kept for accuracy) --
    log_s = jnp.log(s)
    picked_ref[...] = (g - m) - log_s                  # log_softmax at true index
    entropy_ref[...] = log_s - sez / s                 # -(p * log p).sum(-1)


def _vmem_capacity_bytes():
    """Physical VMEM of the current TPU generation (conservative fallback)."""
    try:
        return int(pltpu.get_tpu_info().vmem_capacity_bytes)
    except Exception:
        return 64 * 1024 * 1024        # v7x per-TensorCore VMEM (smallest)


def _choose_tiling(n_rows, vocab, itemsize, vmem_cap_bytes):
    """Pick (row_tile, vocab_chunk).

    row_tile targets ~14 MiB of input-dtype logits per grid step, is budgeted
    against the f32 working set (double-buffered input block + ~8 live f32
    vocab-chunk temporaries), is a multiple of the input sublane tile (8 for
    32-bit, 16 for 16-bit), keeps >= 4-8 grid steps when the row count allows
    it (>= 2 per v7x TensorCore), and prefers a nearby divisor of n_rows so
    the last block is not ragged.
    """
    sub = 8 if itemsize >= 4 else 16
    ck = vocab if vocab <= 2048 else 2048              # in-kernel vocab chunk

    headroom = 8 * 1024 * 1024
    budget = max(16 * 1024 * 1024, vmem_cap_bytes - headroom) - (2 << 20)

    # Per-row VMEM bytes: 2x (double-buffered) input row + ~8 live f32 chunk rows.
    per_row = 2 * vocab * itemsize + 8 * ck * 4 + 64
    rt_cap = max(sub, budget // per_row)

    rt_target = (14 * 1024 * 1024) // max(1, vocab * itemsize)

    rt = int(min(rt_cap, rt_target, 2048))
    rt = max(sub, (rt // sub) * sub)

    n_round = -(-n_rows // sub) * sub
    rt = min(rt, n_round)

    # Enough grid steps for pipelining / megacore sharding.
    if n_rows >= 8 * sub:
        min_steps = 8
    elif n_rows >= 4 * sub:
        min_steps = 4
    else:
        min_steps = 1
    if min_steps > 1:
        rt = min(rt, max(sub, ((-(-n_rows // min_steps)) // sub) * sub))
    rt = max(sub, (rt // sub) * sub)

    # Prefer a nearby divisor of n_rows (avoids the ragged last block entirely).
    if n_rows % rt != 0:
        for cand in range(rt, max(sub, (rt * 3) // 4) - 1, -sub):
            if cand > 0 and n_rows % cand == 0:
                rt = cand
                break
    return int(rt), int(ck)


@functools.partial(jax.jit, static_argnames=("row_tile", "vocab_chunk", "vmem_limit"))
def _lm_loss_jit(y_pred, y_true, *, row_tile, vocab_chunk, vmem_limit):
    T, B, V = y_pred.shape
    N = T * B
    n_blocks = pl.cdiv(N, row_tile)

    # Stream logits in their native dtype (no out-of-kernel cast or pad pass).
    yp = y_pred.reshape(N, V)
    yt = y_true.reshape(N, 1).astype(jnp.int32)

    kernel = functools.partial(_lm_loss_kernel, vocab_chunk=vocab_chunk)
    picked, entropy = pl.pallas_call(
        kernel,
        out_shape=(
            jax.ShapeDtypeStruct((N, 1), jnp.float32),
            jax.ShapeDtypeStruct((N, 1), jnp.float32),
        ),
        grid_spec=pltpu.PrefetchScalarGridSpec(
            num_scalar_prefetch=0,
            grid=(n_blocks,),
            in_specs=[
                pl.BlockSpec((row_tile, V), lambda i: (i, 0)),
                pl.BlockSpec((row_tile, 1), lambda i: (i, 0)),
            ],
            out_specs=[
                pl.BlockSpec((row_tile, 1), lambda i: (i, 0)),
                pl.BlockSpec((row_tile, 1), lambda i: (i, 0)),
            ],
        ),
        compiler_params=pltpu.CompilerParams(
            dimension_semantics=("parallel",),
            vmem_limit_bytes=vmem_limit,
        ),
    )(yp, yt)

    picked = picked.reshape(T, B)
    entropy = entropy.reshape(T, B)

    mask = (y_true != 0).astype(jnp.float32)            # (T, B)
    eps = lax.stop_gradient(entropy + picked)           # mirrors .detach()
    loss_per_batch = -(picked * mask).sum(axis=0)       # (B,)
    return loss_per_batch.mean(), eps


def lm_loss(y_pred, y_true, *, row_tile=None, vocab_chunk=None):
    """y_pred: (T, B, V) float logits (f32 or bf16); y_true: (T, B) int ids.

    Returns (scalar mean masked NLL, eps of shape (T, B) float32).
    """
    T, B, V = y_pred.shape
    itemsize = jnp.dtype(y_pred.dtype).itemsize
    vmem_cap = _vmem_capacity_bytes()

    rt, ck = _choose_tiling(T * B, V, itemsize, vmem_cap)
    if row_tile is not None:
        rt = int(row_tile)
    if vocab_chunk is not None:
        ck = int(vocab_chunk)

    # Scoped-VMEM request: what this tiling actually needs (f32 working set),
    # never exceeding physical VMEM minus headroom (v7x-safe).
    need = 2 * rt * V * itemsize + 8 * rt * ck * 4 + (4 << 20)
    vmem_limit = int(min(max(need, 32 << 20), max(32 << 20, vmem_cap - (8 << 20))))

    return _lm_loss_jit(y_pred, y_true, row_tile=rt, vocab_chunk=ck,
                        vmem_limit=vmem_limit)


def _lm_loss_ref(y_pred, y_true):
    """Pure-JAX reference mirroring the PyTorch module."""
    y_pred = y_pred.astype(jnp.float32)
    log_prob = jax.nn.log_softmax(y_pred, axis=-1)
    prob = jax.nn.softmax(y_pred, axis=-1)
    mask = (y_true != 0).astype(jnp.float32)
    picked = jnp.take_along_axis(log_prob, y_true[..., None], axis=-1)[..., 0]
    entropy = -(prob * log_prob).sum(axis=-1)
    eps = entropy + picked
    loss = -(picked * mask).sum(axis=0)
    return loss.mean(), eps


if __name__ == "__main__":
    import numpy as np

    T, B, V = 8, 4, 128
    key = jax.random.PRNGKey(0)
    k1, k2 = jax.random.split(key)

    y_pred = jax.random.normal(k1, (T, B, V), dtype=jnp.float32)
    # token ids in [0, V); include some 0s so the padding mask is exercised
    y_true = jax.random.randint(k2, (T, B), minval=0, maxval=V, dtype=jnp.int32)
    y_true = y_true.at[0, 0].set(0).at[3, 2].set(0)

    loss, eps = lm_loss(y_pred, y_true)
    jax.block_until_ready((loss, eps))

    ref_loss, ref_eps = _lm_loss_ref(y_pred, y_true)
    np.testing.assert_allclose(np.asarray(loss), np.asarray(ref_loss),
                               rtol=1e-5, atol=1e-5)
    np.testing.assert_allclose(np.asarray(eps), np.asarray(ref_eps),
                               rtol=1e-5, atol=1e-5)

    print("KERNEL_OK")
</pallas_src>

<mosaic_0001>
module attributes {stable_mosaic.version = 11 : i64} {
  func.func @_lm_loss_kernel(%arg0: i32, %arg1: memref<8x128xf32, #tpu.memory_space<vmem>>, %arg2: memref<8x1xi32, #tpu.memory_space<vmem>>, %arg3: memref<8x1xf32, #tpu.memory_space<vmem>>, %arg4: memref<8x1xf32, #tpu.memory_space<vmem>>) attributes {dimension_semantics = [#tpu.dimension_semantics<parallel>], iteration_bounds = array<i64: 4>, scalar_prefetch = 0 : i64, scratch_operands = 0 : i64, tpu.core_type = #tpu.core_type<tc>, window_params = [{transform_indices = @transform_0, window_bounds = array<i64: 8, 128>}, {transform_indices = @transform_1, window_bounds = array<i64: 8, 1>}, {transform_indices = @transform_2, window_bounds = array<i64: 8, 1>}, {transform_indices = @transform_3, window_bounds = array<i64: 8, 1>}]} {
    %c0 = arith.constant 0 : index
    %c0_0 = arith.constant 0 : index
    %0 = vector.load %arg2[%c0, %c0_0] : memref<8x1xi32, #tpu.memory_space<vmem>>, vector<8x1xi32>
    %cst = arith.constant 0xFF800000 : f32
    %1 = vector.broadcast %cst : f32 to vector<8x1xf32>
    %cst_1 = arith.constant 0.000000e+00 : f32
    %2 = vector.broadcast %cst_1 : f32 to vector<8x1xf32>
    %3 = tpu.iota {dimensions = array<i32: 1>} : vector<8x128xi32>
    %c0_2 = arith.constant 0 : index
    %c0_3 = arith.constant 0 : index
    %4 = vector.load %arg1[%c0_2, %c0_3] : memref<8x128xf32, #tpu.memory_space<vmem>>, vector<8x128xf32>
    %cst_4 = arith.constant dense<0xFF800000> : vector<8xf32>
    %5 = vector.multi_reduction <maximumf>, %4, %cst_4 [1] : vector<8x128xf32> to vector<8xf32>
    %6 = vector.shape_cast %5 : vector<8xf32> to vector<8x1xf32>
    %7 = arith.maximumf %1, %6 : vector<8x1xf32>
    %c0_i32 = arith.constant 0 : i32
    %8 = vector.broadcast %c0_i32 : i32 to vector<8x1xi32>
    %9 = arith.subi %0, %8 : vector<8x1xi32>
    %10 = vector.broadcast %9 : vector<8x1xi32> to vector<8x128xi32>
    %11 = arith.cmpi eq, %3, %10 : vector<8x128xi32>
    %cst_5 = arith.constant 0.000000e+00 : f32
    %12 = vector.broadcast %cst_5 : f32 to vector<8x128xf32>
    %13 = arith.select %11, %4, %12 : vector<8x128xi1>, vector<8x128xf32>
    %cst_6 = arith.constant dense<0.000000e+00> : vector<8xf32>
    %14 = vector.multi_reduction <add>, %13, %cst_6 [1] : vector<8x128xf32> to vector<8xf32>
    %15 = vector.shape_cast %14 : vector<8xf32> to vector<8x1xf32>
    %16 = arith.addf %2, %15 : vector<8x1xf32>
    %cst_7 = arith.constant 0.000000e+00 : f32
    %17 = vector.broadcast %cst_7 : f32 to vector<8x1xf32>
    %cst_8 = arith.constant 0.000000e+00 : f32
    %18 = vector.broadcast %cst_8 : f32 to vector<8x1xf32>
    %c0_9 = arith.constant 0 : index
    %c0_10 = arith.constant 0 : index
    %19 = vector.load %arg1[%c0_9, %c0_10] : memref<8x128xf32, #tpu.memory_space<vmem>>, vector<8x128xf32>
    %20 = vector.broadcast %7 : vector<8x1xf32> to vector<8x128xf32>
    %21 = arith.subf %19, %20 : vector<8x128xf32>
    %22 = math.exp %21 : vector<8x128xf32>
    %cst_11 = arith.constant dense<0.000000e+00> : vector<8xf32>
    %23 = vector.multi_reduction <add>, %22, %cst_11 [1] : vector<8x128xf32> to vector<8xf32>
    %24 = vector.shape_cast %23 : vector<8xf32> to vector<8x1xf32>
    %25 = arith.addf %17, %24 : vector<8x1xf32>
    %26 = arith.mulf %22, %21 : vector<8x128xf32>
    %cst_12 = arith.constant dense<0.000000e+00> : vector<8xf32>
    %27 = vector.multi_reduction <add>, %26, %cst_12 [1] : vector<8x128xf32> to vector<8xf32>
    %28 = vector.shape_cast %27 : vector<8xf32> to vector<8x1xf32>
    %29 = arith.addf %18, %28 : vector<8x1xf32>
    %30 = math.log %25 : vector<8x1xf32>
    %31 = arith.subf %16, %7 : vector<8x1xf32>
    %32 = arith.subf %31, %30 : vector<8x1xf32>
    %c0_13 = arith.constant 0 : index
    %c0_14 = arith.constant 0 : index
    %33 = vector.load %arg3[%c0_13, %c0_14] : memref<8x1xf32, #tpu.memory_space<vmem>>, vector<8x1xf32>
    tpu.vector_store %arg3[%c0_13, %c0_14], %32 {strides = array<i32>} : memref<8x1xf32, #tpu.memory_space<vmem>>, vector<8x1xf32>,
    %34 = arith.divf %29, %25 : vector<8x1xf32>
    %35 = arith.subf %30, %34 : vector<8x1xf32>
    %c0_15 = arith.constant 0 : index
    %c0_16 = arith.constant 0 : index
    %36 = vector.load %arg4[%c0_15, %c0_16] : memref<8x1xf32, #tpu.memory_space<vmem>>, vector<8x1xf32>
    tpu.vector_store %arg4[%c0_15, %c0_16], %35 {strides = array<i32>} : memref<8x1xf32, #tpu.memory_space<vmem>>, vector<8x1xf32>,
    return
  }
  func.func @transform_0(%arg0: i32) -> (i32, i32) {
    %c0_i32 = arith.constant 0 : i32
    %c0_i32_0 = arith.constant 0 : i32
    return %arg0, %c0_i32 : i32, i32
  }
  func.func @transform_1(%arg0: i32) -> (i32, i32) {
    %c0_i32 = arith.constant 0 : i32
    %c0_i32_0 = arith.constant 0 : i32
    return %arg0, %c0_i32 : i32, i32
  }
  func.func @transform_2(%arg0: i32) -> (i32, i32) {
    %c0_i32 = arith.constant 0 : i32
    %c0_i32_0 = arith.constant 0 : i32
    return %arg0, %c0_i32 : i32, i32
  }
  func.func @transform_3(%arg0: i32) -> (i32, i32) {
    %c0_i32 = arith.constant 0 : i32
    %c0_i32_0 = arith.constant 0 : i32
    return %arg0, %c0_i32 : i32, i32
  }
}

</mosaic_0001>

<llo_original>
// kernel: _lm_loss_jit.1
$region0: #{_lm_loss_jit.1}
  #allocation0 [shape = 'u32[]', space=smem, size = 0x4, offset = 0x4, fixed_abs, tag = 'smem constant byte address 0x4 - core index']
  #allocation1 [shape = 'u32[72,128]{1,0:T(1,128)}', space=vmem, size = 0x9000, scoped, tag = 'internal scratch']
  %s0 = inlined_call_operand.vmem [shape: f32[32,128], index: 0, kind: input, shape index: {}]
  %s1 = inlined_call_operand.vmem [shape: s32[32,1], index: 1, kind: input, shape index: {}]
  %s2 = inlined_call_operand.vmem [shape: f32[32,1], index: 2, kind: output, shape index: {0}]
  %s3 = inlined_call_operand.vmem [shape: f32[32,1], index: 3, kind: output, shape index: {1}]
  %4 = xla_tuple %s2, %s3
  %s5 = sld [smem:[#allocation0]]
  $region49: #{_lm_loss_jit.1} parent=0
    _
  %s7 = ssub.s32 1, %s5
  %s8 = scalar_select 0, %s7, %s5
  loop: start=0, step=1, limit=6
  $region2: #{_lm_loss_jit.1} parent=0 // loop_pre_header
    _
  $region3: #{_lm_loss_jit.1} parent=0 // loop_header
    %s10 = sphi 0, %s14
    %p11 = scmp.ge.s32.totalorder %s10, 6
    %s20 = sphi 0, %s22
    %s23 = sphi 0, %s20
    %s24 = sphi 0, %s23
    %s40 = sphi 0, %s24
    %s46 = sphi 0, %s48
    %s49 = sphi 0, %s46
    %s50 = sphi 0, %s49
    %s66 = sphi 0, %s50
    %s72 = sphi 0, %s74
    %s75 = sphi 0, %s72
    %s76 = sphi 0, %s75
    %s92 = sphi 0, %s76
    %s98 = sphi 0, %s100
    %s101 = sphi 0, %s98
    %s102 = sphi 0, %s101
    %s118 = sphi 0, %s102
  $region4: #{_lm_loss_jit.1} parent=0 // loop_header_branch
    %13 = sbr.rel (%p11) target = $region8
  $region5: #{_lm_loss_jit.1} parent=0 // loop_body
    %s15 = ssub.s32 %s10, 1
    %s16 = ssub.s32 %s10, 2
    %s17 = sadd.s32 %s10, 1
    %s18 = ssub.s32 %s10, %s17
    %p19 = scmp.eq.s32.totalorder %s18, 0
    %s21 = sadd.s32 %s20, 1
    %s22 = scalar_select %p19, %s20, %s21
    %p25 = pneg %p19
    %p26 = scmp.eq.s32.totalorder %s10, 3
    %p27 = por %p25, %p26
    %p28 = scmp.ne.s32.totalorder %s20, %s23
    %p29 = scmp.eq.s32.totalorder %s10, 0
    %p30 = por %p28, %p29
    %p31 = scmp.ne.s32.totalorder %s20, %s23
    %p32 = scmp.eq.s32.totalorder %s15, 3
    %p33 = por %p31, %p32
    %p34 = scmp.ne.s32.totalorder %s23, %s24
    %p35 = scmp.eq.s32.totalorder %s15, 0
    %p36 = por %p34, %p35
    %p37 = scmp.ne.s32.totalorder %s23, %s24
    %p38 = scmp.eq.s32.totalorder %s16, 3
    %p39 = por %p37, %p38
    %p41 = scmp.ne.s32.totalorder %s24, %s40
    %p42 = scmp.eq.s32.totalorder %s16, 0
    %p43 = por %p41, %p42
    %s44 = ssub.s32 %s10, %s17
    %p45 = scmp.eq.s32.totalorder %s44, 0
    %s47 = sadd.s32 %s46, 1
    %s48 = scalar_select %p45, %s46, %s47
    %p51 = pneg %p45
    %p52 = scmp.eq.s32.totalorder %s10, 3
    %p53 = por %p51, %p52
    %p54 = scmp.ne.s32.totalorder %s46, %s49
    %p55 = scmp.eq.s32.totalorder %s10, 0
    %p56 = por %p54, %p55
    %p57 = scmp.ne.s32.totalorder %s46, %s49
    %p58 = scmp.eq.s32.totalorder %s15, 3
    %p59 = por %p57, %p58
    %p60 = scmp.ne.s32.totalorder %s49, %s50
    %p61 = scmp.eq.s32.totalorder %s15, 0
    %p62 = por %p60, %p61
    %p63 = scmp.ne.s32.totalorder %s49, %s50
    %p64 = scmp.eq.s32.totalorder %s16, 3
    %p65 = por %p63, %p64
    %p67 = scmp.ne.s32.totalorder %s50, %s66
    %p68 = scmp.eq.s32.totalorder %s16, 0
    %p69 = por %p67, %p68
    %s70 = ssub.s32 %s10, %s17
    %p71 = scmp.eq.s32.totalorder %s70, 0
    %s73 = sadd.s32 %s72, 1
    %s74 = scalar_select %p71, %s72, %s73
    %p77 = pneg %p71
    %p78 = scmp.eq.s32.totalorder %s10, 3
    %p79 = por %p77, %p78
    %p80 = scmp.ne.s32.totalorder %s72, %s75
    %p81 = scmp.eq.s32.totalorder %s10, 0
    %p82 = por %p80, %p81
    %p83 = scmp.ne.s32.totalorder %s72, %s75
    %p84 = scmp.eq.s32.totalorder %s15, 3
    %p85 = por %p83, %p84
    %p86 = scmp.ne.s32.totalorder %s75, %s76
    %p87 = scmp.eq.s32.totalorder %s15, 0
    %p88 = por %p86, %p87
    %p89 = scmp.ne.s32.totalorder %s75, %s76
    %p90 = scmp.eq.s32.totalorder %s16, 3
    %p91 = por %p89, %p90
    %p93 = scmp.ne.s32.totalorder %s76, %s92
    %p94 = scmp.eq.s32.totalorder %s16, 0
    %p95 = por %p93, %p94
    %s96 = ssub.s32 %s10, %s17
    %p97 = scmp.eq.s32.totalorder %s96, 0
    %s99 = sadd.s32 %s98, 1
    %s100 = scalar_select %p97, %s98, %s99
    %p103 = pneg %p97
    %p104 = scmp.eq.s32.totalorder %s10, 3
    %p105 = por %p103, %p104
    %p106 = scmp.ne.s32.totalorder %s98, %s101
    %p107 = scmp.eq.s32.totalorder %s10, 0
    %p108 = por %p106, %p107
    %p109 = scmp.ne.s32.totalorder %s98, %s101
    %p110 = scmp.eq.s32.totalorder %s15, 3
    %p111 = por %p109, %p110
    %p112 = scmp.ne.s32.totalorder %s101, %s102
    %p113 = scmp.eq.s32.totalorder %s15, 0
    %p114 = por %p112, %p113
    %p115 = scmp.ne.s32.totalorder %s101, %s102
    %p116 = scmp.eq.s32.totalorder %s16, 3
    %p117 = por %p115, %p116
    %p119 = scmp.ne.s32.totalorder %s102, %s118
    %p120 = scmp.eq.s32.totalorder %s16, 0
    %p121 = por %p119, %p120
    %p122 = scmp.le.s32.totalorder 1, %s10
    %p123 = scmp.lt.s32.totalorder %s10, 5
    %p124 = pnand %p122, %p123
    %p125 = pneg %p124
    // Predicated region
    $region9: #{_lm_loss_jit.1} parent=5 // pred_check
      _
    $region10: #{_lm_loss_jit.1} parent=5 // pred_check_branch
      %127 = sbr.rel (%p124) target = $region12
    $region11: #{_lm_loss_jit.1} parent=5 // pred_region
      %s128 = ssub.s32 %s10, 1
    $region12: #{_lm_loss_jit.1} parent=5 // pred_fallthru
      _
    %p129 = scmp.lt.s32.totalorder %s10, 4
    // Predicated region
    $region13: #{_lm_loss_jit.1} parent=5 // pred_check
      %p130 = pneg %p129
    $region14: #{_lm_loss_jit.1} parent=5 // pred_check_branch
      %132 = sbr.rel (%p130) target = $region16
    $region15: #{_lm_loss_jit.1} parent=5 // pred_region
      // Predicated region
      $region17: #{_lm_loss_jit.1} parent=15 // pred_check
        %p133 = pneg %p30
      $region18: #{_lm_loss_jit.1} parent=15 // pred_check_branch
        %135 = sbr.rel (%p133) target = $region20
      $region19: #{_lm_loss_jit.1} parent=15 // pred_region
        %p136 = scmp.lt.s32.totalorder %s10, 3
        %s137 = scalar_select %p136, %s10, 3
        %s138 = smul.addr %s137, 8
        %s139 = scalar_lea.vmem %s0, %s138
      $region20: #{_lm_loss_jit.1} parent=15 // pred_fallthru
        _
      // Predicated region
      $region21: #{_lm_loss_jit.1} parent=15 // pred_check
        %p140 = pneg %p56
      $region22: #{_lm_loss_jit.1} parent=15 // pred_check_branch
        %142 = sbr.rel (%p140) target = $region24
      $region23: #{_lm_loss_jit.1} parent=15 // pred_region
        %p143 = scmp.lt.s32.totalorder %s10, 3
        %s144 = scalar_select %p143, %s10, 3
        %s145 = smul.addr %s144, 8
        %s146 = scalar_lea.vmem %s1, %s145
      $region24: #{_lm_loss_jit.1} parent=15 // pred_fallthru
        _
    $region16: #{_lm_loss_jit.1} parent=5 // pred_fallthru
      _
    %p147 = scmp.le.s32.totalorder 1, %s10
    %p148 = scmp.lt.s32.totalorder %s10, 5
    %p149 = pnand %p147, %p148
    %p150 = pneg %p149
    // Predicated region
    $region25: #{_lm_loss_jit.1} parent=5 // pred_check
      _
    $region26: #{_lm_loss_jit.1} parent=5 // pred_check_branch
      %152 = sbr.rel (%p149) target = $region28
    $region27: #{_lm_loss_jit.1} parent=5 // pred_region
      %s153 = ssub.s32 %s10, 1
      %p154 = scmp.lt.s32.totalorder %s15, 3
      %s155 = scalar_select %p154, %s15, 3
      %s156 = smul.addr %s155, 8
      %s157 = scalar_lea.vmem %s0, %s156
      %p158 = pneg %p36
      %p159 = pneg %p33
      %p160 = scmp.lt.s32.totalorder %s15, 3
      %s161 = scalar_select %p160, %s15, 3
      %s162 = smul.addr %s161, 8
      %s163 = scalar_lea.vmem %s1, %s162
      %p164 = pneg %p62
      %p165 = pneg %p59
      %p166 = pneg %p88
      %p167 = pneg %p85
      %p168 = scmp.lt.s32.totalorder %s15, 3
      %s169 = scalar_select %p168, %s15, 3
      %s170 = smul.addr %s169, 8
      %s171 = scalar_lea.vmem %s2, %s170
      %p172 = pneg %p114
      %p173 = pneg %p111
      %p174 = scmp.lt.s32.totalorder %s15, 3
      %s175 = scalar_select %p174, %s15, 3
      %s176 = smul.addr %s175, 8
      %s177 = scalar_lea.vmem %s3, %s176
      %p178 = scmp.lt.s32.totalorder %s15, 3
      %s179 = scalar_select %p178, %s15, 3
      %s180 = smul.addr %s179, 8
      %s181 = scalar_lea.vmem %s0, %s180
      %p182 = scmp.lt.s32.totalorder %s15, 3
      %s183 = scalar_select %p182, %s15, 3
      %s184 = smul.addr %s183, 8
      %s185 = scalar_lea.vmem %s1, %s184
      %p186 = scmp.lt.s32.totalorder %s15, 3
      %s187 = scalar_select %p186, %s15, 3
      %s188 = smul.addr %s187, 8
      %s189 = scalar_lea.vmem %s2, %s188
      %p190 = scmp.lt.s32.totalorder %s15, 3
      %s191 = scalar_select %p190, %s15, 3
      %s192 = smul.addr %s191, 8
      %s193 = scalar_lea.vmem %s3, %s192
      %v194 = vld [vmem:[%s185] sm:$0xff]
      %v195 = vlaneseq
      %v196 = vand.u32 %v195, 127
      %v197 = vld [vmem:[%s181] sm:$0xff]
      %198 = vmax.xlane.f32.xlu0 %v197
      %v199 = vpop.xlane.xlu0 %198
      %200 = vset.pattern.permute.xlu0 0
      %201 = vperm.xlu0 %200, %v194
      %v202 = vpop.permute.xlu0 %201
      %vm203 = vcmp.eq.s32.totalorder %v196, %v202
      %v204 = vsel %vm203, %v197, 0.0
      %205 = vadd.xlane.f32.xlu0 %v204
      %v206 = vpop.xlane.xlu0 %205
      %v207 = vadd.f32 %v206, 0.0
      %v208 = vsub.f32 %v197, %v199
      %v209 = vmul.f32 %v208, 1.442695
      %v210 = vpow.pop %v209
      %211 = vadd.xlane.f32.xlu0 %v210
      %v212 = vpop.xlane.xlu0 %211
      %v213 = vadd.f32 %v212, 0.0
      %v214 = vmul.f32 %v210, %v208
      %215 = vadd.xlane.f32.xlu0 %v214
      %v216 = vpop.xlane.xlu0 %215
      %v217 = vadd.f32 %v216, 0.0
      %v218 = vlog2.pop %v213
      %v219 = vmul.f32 %v218, 0.6931472
      %v220 = vsub.f32 %v207, %v199
      %v221 = vsub.f32 %v220, %v219
      %vm222 = vcmask 7168
      %223 = vst.msk [vmem:[%s189] sm:$0xff] %vm222, %v221
      %v224 = vrcp.pop %v213
      %v225 = vmul.f32 %v213, %v224
      %v226 = vsub.f32 1.0, %v225
      %v227 = vmul.f32 %v224, %v226
      %v228 = vadd.f32 %v224, %v227
      %vm229 = vweird.f32 %v213
      %vm230 = vweird.f32 %v224
      %vm231 = vmor %vm229, %vm230
      %v232 = vsel %vm231, %v224, %v228
      %v233 = vand.u32 2147483647, %v213
      %vm234 = vcmp.eq.f32.partialorder %v233, 8.507059e+37
      %v235 = vand.u32 %v213, 2147483648
      %v236 = vor.u32 1.1754944e-38, %v235
      %v237 = vsel %vm234, %v236, %v232
      %v238 = vmul.f32 %v217, %v237
      %v239 = vsub.f32 %v219, %v238
      %240 = vst.msk [vmem:[%s193] sm:$0xff] %vm222, %v239
      %p241 = scmp.lt.s32.totalorder %s15, 3
      %s242 = scalar_select %p241, %s15, 3
      %s243 = smul.addr %s242, 8
      %s244 = scalar_lea.vmem %s2, %s243
      %p245 = scmp.lt.s32.totalorder %s15, 3
      %s246 = scalar_select %p245, %s15, 3
      %s247 = smul.addr %s246, 8
      %s248 = scalar_lea.vmem %s3, %s247
      // Predicated region
      $region29: #{_lm_loss_jit.1} parent=27 // pred_check
        %p249 = pneg %p85
      $region30: #{_lm_loss_jit.1} parent=27 // pred_check_branch
        %251 = sbr.rel (%p249) target = $region32
      $region31: #{_lm_loss_jit.1} parent=27 // pred_region
        _
      $region32: #{_lm_loss_jit.1} parent=27 // pred_fallthru
        _
      // Predicated region
      $region33: #{_lm_loss_jit.1} parent=27 // pred_check
        %p252 = pneg %p111
      $region34: #{_lm_loss_jit.1} parent=27 // pred_check_branch
        %254 = sbr.rel (%p252) target = $region36
      $region35: #{_lm_loss_jit.1} parent=27 // pred_region
        _
      $region36: #{_lm_loss_jit.1} parent=27 // pred_fallthru
        _
    $region28: #{_lm_loss_jit.1} parent=5 // pred_fallthru
      _
    %p255 = scmp.le.s32.totalorder 2, %s10
    // Predicated region
    $region37: #{_lm_loss_jit.1} parent=5 // pred_check
      %p256 = pneg %p255
    $region38: #{_lm_loss_jit.1} parent=5 // pred_check_branch
      %258 = sbr.rel (%p256) target = $region40
    $region39: #{_lm_loss_jit.1} parent=5 // pred_region
      %s259 = ssub.s32 %s10, 2
      // Predicated region
      $region41: #{_lm_loss_jit.1} parent=39 // pred_check
        %p260 = pneg %p91
      $region42: #{_lm_loss_jit.1} parent=39 // pred_check_branch
        %262 = sbr.rel (%p260) target = $region44
      $region43: #{_lm_loss_jit.1} parent=39 // pred_region
        %p263 = scmp.lt.s32.totalorder %s16, 3
        %s264 = scalar_select %p263, %s16, 3
        %s265 = smul.addr %s264, 8
        %s266 = scalar_lea.vmem %s2, %s265
      $region44: #{_lm_loss_jit.1} parent=39 // pred_fallthru
        _
      // Predicated region
      $region45: #{_lm_loss_jit.1} parent=39 // pred_check
        %p267 = pneg %p117
      $region46: #{_lm_loss_jit.1} parent=39 // pred_check_branch
        %269 = sbr.rel (%p267) target = $region48
      $region47: #{_lm_loss_jit.1} parent=39 // pred_region
        %p270 = scmp.lt.s32.totalorder %s16, 3
        %s271 = scalar_select %p270, %s16, 3
        %s272 = smul.addr %s271, 8
        %s273 = scalar_lea.vmem %s3, %s272
      $region48: #{_lm_loss_jit.1} parent=39 // pred_fallthru
        _
    $region40: #{_lm_loss_jit.1} parent=5 // pred_fallthru
      _
  $region6: #{_lm_loss_jit.1} parent=0 // loop_footer
    %s14 = sadd.s32 1, %s10
  $region7: #{_lm_loss_jit.1} parent=0 // loop_footer_branch
    %9 = sbr.rel target = $region3
  $region8: #{_lm_loss_jit.1} parent=0 // loop_exit
    _

</llo_original>
